<compile_context>
chip_gen: v5e
topology: v5e:2x2
jax: 0.10.0
libtpu: 0.0.40
codegen_flags: <defaults>
</compile_context>

<pallas_src>
import jax
import jax.numpy as jnp
from jax.experimental import pallas as pl
from jax.experimental.pallas import tpu as pltpu


# ---------------------------------------------------------------------------
# Kernels
# ---------------------------------------------------------------------------
def highway_kernel_fused(x_ref, w_ref, b_ref, o_ref):
    """One batch tile, fused single-MXU-pass variant (weights fit VMEM).

    x_ref : (tb, E)   input tile (caller dtype) -- exact carry path
    w_ref : (E, 2E)   fused [Wp^T | Wg^T] weights (bf16), VMEM-resident
    b_ref : (1, 2E)   fused [bp | bg] biases (f32), VMEM-resident
    o_ref : (tb, E)   output tile
    """
    x = x_ref[...]
    E = o_ref.shape[-1]

    # Single fused MXU pass: (tb, E) @ (E, 2E) -> (tb, 2E), f32 accumulation.
    lhs = x.astype(w_ref.dtype)
    y = jnp.dot(lhs, w_ref[...], preferred_element_type=jnp.float32)
    y = y + b_ref[...]

    proj = jnp.maximum(y[:, :E], 0.0)        # ReLU        (VPU)
    gate = jax.nn.sigmoid(y[:, E:])          # sigmoid     (EUP slot, ~free)

    xf = x.astype(jnp.float32)
    # x + gate*(proj - x) == gate*proj + (1-gate)*x, one fewer vector multiply.
    o_ref[...] = (xf + gate * (proj - xf)).astype(o_ref.dtype)


def highway_kernel_coltiled(x_ref, w_ref, b_ref, o_ref):
    """Column-tiled variant for large E (weights stacked as (2, E, E)).

    x_ref : (tb, E)      full-width input tile (matmul LHS + carry source)
    w_ref : (2, E, tn)   column tile of stacked [Wp^T ; Wg^T] (bf16)
    b_ref : (2, 1, tn)   matching bias columns (f32)
    o_ref : (tb, tn)     output column tile
    """
    tn = o_ref.shape[-1]
    x = x_ref[...]
    lhs = x.astype(w_ref.dtype)

    yp = jnp.dot(lhs, w_ref[0], preferred_element_type=jnp.float32) + b_ref[0]
    yg = jnp.dot(lhs, w_ref[1], preferred_element_type=jnp.float32) + b_ref[1]

    proj = jnp.maximum(yp, 0.0)
    gate = jax.nn.sigmoid(yg)

    col = pl.multiple_of(pl.program_id(1) * tn, 128)
    xs = x_ref[:, pl.ds(col, tn)].astype(jnp.float32)
    o_ref[...] = (xs + gate * (proj - xs)).astype(o_ref.dtype)
    # TODO(synk): add a K grid axis (f32 accumulator scratch + pl.when
    # init/finalize) for extremely large E where even a (2, E, tn) weight tile
    # plus the (tb, E) x tile overflow the v7x VMEM budget.


# ---------------------------------------------------------------------------
# Parameter preparation (run ONCE, outside the per-call forward path)
# ---------------------------------------------------------------------------
def prepare_highway_params(w_proj, b_proj, w_gate, b_gate, *,
                           matmul_dtype=jnp.bfloat16, column_tiled=None):
    """Fold PyTorch-layout (out,in) Linear weights into a kernel-ready layout.

    Returns ("fused", (E,2E) w, (1,2E) b)  when the whole weight comfortably
    fits VMEM, or ("stacked", (2,E,E) w, (2,1,E) b) for the column-tiled
    large-E path. Transpose/concat/cast happen once, not per forward call.
    """
    E = w_proj.shape[0]
    assert E % 128 == 0, (
        "emb_dim must be a multiple of 128 for lane-aligned proj/gate splits "
        "(pad the weights/inputs to the next multiple of 128 otherwise).")
    # TODO(synk): add an explicit pad-to-128 path for non-aligned emb_dim.

    if column_tiled is None:
        # Switch to the column-tiled layout once the resident fused weight
        # alone would eat a large share of the smallest (v7x, 64 MiB) VMEM.
        weight_bytes = 2 * E * E * jnp.dtype(matmul_dtype).itemsize
        column_tiled = weight_bytes > (24 << 20)

    if column_tiled:
        w = jnp.stack([w_proj.T, w_gate.T]).astype(matmul_dtype)          # (2,E,E)
        b = jnp.stack([b_proj, b_gate]).reshape(2, 1, E).astype(jnp.float32)
        return ("stacked", w, b)

    w = jnp.concatenate([w_proj.T, w_gate.T], axis=1).astype(matmul_dtype)  # (E,2E)
    b = jnp.concatenate([b_proj, b_gate]).reshape(1, 2 * E).astype(jnp.float32)
    return ("fused", w, b)


# ---------------------------------------------------------------------------
# Tiling / budget helpers
# ---------------------------------------------------------------------------
def _num_tensorcores_per_chip():
    """v7x has 2 TensorCores/chip; v5e/v6e have 1. Default to 1 (safe)."""
    try:
        kind = jax.devices()[0].device_kind.lower()
    except Exception:
        return 1
    return 2 if ("v7" in kind or "7x" in kind) else 1


def _choose_tile_b(B, tile_b, num_tc):
    """Batch tile. grid = cdiv(B, tb) with a masked partial last tile, so tb
    need not divide B (no degenerate 8-row fallback)."""
    if B <= 8:
        return B
    tb = min(tile_b, B)
    if num_tc >= 2 and B <= tile_b and B >= 32:
        # v7x megacore: give each TensorCore one balanced, 16-aligned half.
        half = (B + 1) // 2
        return min(B, ((half + 15) // 16) * 16)
    # Single-TC / streaming case: round DOWN to the best MXU/sublane alignment.
    if tb >= 256:
        tb = (tb // 256) * 256
    elif tb >= 16:
        tb = (tb // 16) * 16
    else:
        tb = max(8, (tb // 8) * 8)
    return tb


def _choose_tile_n(E, tile_n):
    """Output-column tile for the stacked path: multiple of 128, divides E."""
    tn = min(tile_n, E)
    tn = max(128, (tn // 128) * 128)
    while E % tn != 0:
        tn -= 128
    return tn


def _vmem_limit_bytes(working_set):
    """Generation-aware VMEM budget: ~75% of physical capacity as the ceiling
    (leaves headroom for compiler-internal scratch), 32 MiB floor."""
    cap = 64 << 20  # conservative default = v7x physical per-TC VMEM
    try:
        info = pltpu.get_tpu_info()
        cap = int(getattr(info, "vmem_capacity_bytes", cap) or cap)
    except Exception:
        pass
    ceiling = (cap * 3) // 4
    floor = min(32 << 20, ceiling)
    return int(min(max(int(1.5 * working_set), floor), ceiling))


# ---------------------------------------------------------------------------
# Wrapper
# ---------------------------------------------------------------------------
def highway_forward(x, params, *, tile_b=512, tile_n=512, out_dtype=None):
    """Highway forward pass.

    x        : (B, E) activations. For HBM-bound shapes you may pass bf16 x
               and/or out_dtype=jnp.bfloat16 (halves I/O bytes; the carry path
               then uses the bf16-rounded x -- fine for inference).
    params   : output of prepare_highway_params (either layout).
    """
    layout, w, b = params
    B, E = x.shape
    out_dtype = x.dtype if out_dtype is None else out_dtype

    num_tc = _num_tensorcores_per_chip()
    tb = _choose_tile_b(B, tile_b, num_tc)
    grid_b = pl.cdiv(B, tb)

    def isz(a):
        return jnp.dtype(a.dtype).itemsize
    out_isz = jnp.dtype(out_dtype).itemsize

    flops = 2 * B * E * (2 * E) + 6 * B * E
    bytes_accessed = (x.size * isz(x) + w.size * isz(w)
                      + b.size * isz(b) + B * E * out_isz)
    cost = pl.CostEstimate(flops=flops, transcendentals=B * E,
                           bytes_accessed=bytes_accessed)

    if layout == "fused":
        assert w.shape == (E, 2 * E) and b.shape == (1, 2 * E)
        working_set = (2 * tb * E * isz(x)          # x tile, double-buffered
                       + 2 * tb * E * out_isz       # out tile, double-buffered
                       + (E * 2 * E) * isz(w)       # weights, SINGLE-buffered
                       + 2 * E * isz(b)             # bias, single-buffered
                       + 4 * tb * 2 * E * 4)        # f32 intermediates headroom
        return pl.pallas_call(
            highway_kernel_fused,
            out_shape=jax.ShapeDtypeStruct((B, E), out_dtype),
            grid_spec=pltpu.PrefetchScalarGridSpec(
                num_scalar_prefetch=0,
                grid=(grid_b,),
                in_specs=[
                    pl.BlockSpec((tb, E), lambda i: (i, 0)),
                    # Resident operands (constant block index): single buffer.
                    pl.BlockSpec((E, 2 * E), lambda i: (0, 0),
                                 pipeline_mode=pl.Buffered(1)),
                    pl.BlockSpec((1, 2 * E), lambda i: (0, 0),
                                 pipeline_mode=pl.Buffered(1)),
                ],
                out_specs=pl.BlockSpec((tb, E), lambda i: (i, 0)),
            ),
            compiler_params=pltpu.CompilerParams(
                dimension_semantics=("parallel",),
                vmem_limit_bytes=_vmem_limit_bytes(working_set),
            ),
            cost_estimate=cost,
        )(x, w, b)

    # ----- layout == "stacked": column-tiled over output columns (large E) ---
    assert w.shape == (2, E, E) and b.shape == (2, 1, E)
    tn = _choose_tile_n(E, tile_n)
    grid_n = E // tn
    working_set = (2 * tb * E * isz(x)              # x tile (resident across j)
                   + 2 * tb * tn * out_isz          # out column tile
                   + 2 * 2 * E * tn * isz(w)        # weight column tile, 2 bufs
                   + 2 * 2 * tn * isz(b)            # bias columns
                   + 4 * tb * tn * 4)               # f32 intermediates headroom
    return pl.pallas_call(
        highway_kernel_coltiled,
        out_shape=jax.ShapeDtypeStruct((B, E), out_dtype),
        grid_spec=pltpu.PrefetchScalarGridSpec(
            num_scalar_prefetch=0,
            grid=(grid_b, grid_n),
            in_specs=[
                pl.BlockSpec((tb, E), lambda i, j: (i, 0)),
                pl.BlockSpec((2, E, tn), lambda i, j: (0, 0, j)),
                pl.BlockSpec((2, 1, tn), lambda i, j: (0, 0, j)),
            ],
            out_specs=pl.BlockSpec((tb, tn), lambda i, j: (i, j)),
        ),
        compiler_params=pltpu.CompilerParams(
            dimension_semantics=("parallel", "parallel"),
            vmem_limit_bytes=_vmem_limit_bytes(working_set),
        ),
        cost_estimate=cost,
    )(x, w, b)


# ---------------------------------------------------------------------------
# References
# ---------------------------------------------------------------------------
def highway_reference_f32(x, w_proj, b_proj, w_gate, b_gate):
    proj = jax.nn.relu(x @ w_proj.T + b_proj)
    gate = jax.nn.sigmoid(x @ w_gate.T + b_gate)
    return gate * proj + (1.0 - gate) * x


def highway_reference_bf16(x, w_proj, b_proj, w_gate, b_gate):
    # Same rounding model as the kernel (f32 I/O): bf16 matmul operands,
    # f32 accumulation, exact-x carry path.
    xb = x.astype(jnp.bfloat16)
    proj = jax.nn.relu(
        jnp.dot(xb, w_proj.T.astype(jnp.bfloat16),
                preferred_element_type=jnp.float32) + b_proj)
    gate = jax.nn.sigmoid(
        jnp.dot(xb, w_gate.T.astype(jnp.bfloat16),
                preferred_element_type=jnp.float32) + b_gate)
    return x + gate * (proj - x)


if __name__ == "__main__":
    emb_dim = 256

    key = jax.random.PRNGKey(0)
    kx, kwp, kbp, kwg, kbg, kx2 = jax.random.split(key, 6)

    bound = 1.0 / (emb_dim ** 0.5)
    w_proj = jax.random.uniform(kwp, (emb_dim, emb_dim), jnp.float32, -bound, bound)
    b_proj = jax.random.uniform(kbp, (emb_dim,), jnp.float32, -bound, bound)
    w_gate = jax.random.uniform(kwg, (emb_dim, emb_dim), jnp.float32, -bound, bound)
    b_gate = jax.random.uniform(kbg, (emb_dim,), jnp.float32, -bound, bound)

    # One-time parameter prep (transpose + fuse/stack + bf16 cast).
    params_fused = prepare_highway_params(w_proj, b_proj, w_gate, b_gate,
                                          column_tiled=False)
    params_tiled = prepare_highway_params(w_proj, b_proj, w_gate, b_gate,
                                          column_tiled=True)

    # 1) Fused single-MXU-pass path, small batch.
    x = jax.random.normal(kx, (8, emb_dim), dtype=jnp.float32)
    out = jax.block_until_ready(highway_forward(x, params_fused))
    assert out.shape == x.shape and out.dtype == x.dtype
    ref16 = highway_reference_bf16(x, w_proj, b_proj, w_gate, b_gate)
    ref32 = highway_reference_f32(x, w_proj, b_proj, w_gate, b_gate)
    assert jnp.allclose(out, ref16, atol=2e-3, rtol=2e-3), "fused vs bf16 ref"
    assert jnp.allclose(out, ref32, atol=5e-2, rtol=5e-2), "fused vs f32 ref"

    # 2) Column-tiled (large-E layout) path, 2 output-column tiles.
    out_t = jax.block_until_ready(highway_forward(x, params_tiled, tile_n=128))
    assert jnp.allclose(out_t, ref16, atol=2e-3, rtol=2e-3), "coltiled vs bf16 ref"
    assert jnp.allclose(out_t, ref32, atol=5e-2, rtol=5e-2), "coltiled vs f32 ref"

    # 3) Non-divisible batch: cdiv grid with masked partial last tile.
    x3 = jax.random.normal(kx2, (40, emb_dim), dtype=jnp.float32)
    out3 = jax.block_until_ready(highway_forward(x3, params_fused, tile_b=16))
    assert out3.shape == x3.shape
    ref3 = highway_reference_bf16(x3, w_proj, b_proj, w_gate, b_gate)
    assert jnp.allclose(out3, ref3, atol=2e-3, rtol=2e-3), "partial-tile mismatch"

    # 4) bf16 I/O option for the HBM-bound regime (carry uses bf16-rounded x).
    out4 = jax.block_until_ready(
        highway_forward(x.astype(jnp.bfloat16), params_fused,
                        out_dtype=jnp.bfloat16))
    assert out4.dtype == jnp.bfloat16
    assert jnp.allclose(out4.astype(jnp.float32), ref32, atol=0.12, rtol=0.12), \
        "bf16-I/O mismatch"

    print("KERNEL_OK")
</pallas_src>

<mosaic_0001>
module attributes {stable_mosaic.version = 11 : i64} {
  func.func @highway_kernel_fused(%arg0: i32, %arg1: memref<8x256xf32, #tpu.memory_space<vmem>>, %arg2: memref<256x512xbf16, #tpu.memory_space<vmem>>, %arg3: memref<1x512xf32, #tpu.memory_space<vmem>>, %arg4: memref<8x256xf32, #tpu.memory_space<vmem>>) attributes {dimension_semantics = [#tpu.dimension_semantics<parallel>], iteration_bounds = array<i64: 1>, scalar_prefetch = 0 : i64, scratch_operands = 0 : i64, tpu.core_type = #tpu.core_type<tc>, window_params = [{transform_indices = @transform_0, window_bounds = array<i64: 8, 256>}, {pipeline_mode = #tpu.pipeline_mode<synchronous>, transform_indices = @transform_1, window_bounds = array<i64: 256, 512>}, {pipeline_mode = #tpu.pipeline_mode<synchronous>, transform_indices = @transform_2, window_bounds = array<i64: 1, 512>}, {transform_indices = @transform_3, window_bounds = array<i64: 8, 256>}]} {
    %c0 = arith.constant 0 : index
    %c0_0 = arith.constant 0 : index
    %0 = vector.load %arg1[%c0, %c0_0] : memref<8x256xf32, #tpu.memory_space<vmem>>, vector<8x256xf32>
    %1 = arith.truncf %0 : vector<8x256xf32> to vector<8x256xbf16>
    %c0_1 = arith.constant 0 : index
    %c0_2 = arith.constant 0 : index
    %2 = vector.load %arg2[%c0_1, %c0_2] : memref<256x512xbf16, #tpu.memory_space<vmem>>, vector<256x512xbf16>
    %cst = arith.constant dense<0.000000e+00> : vector<8x512xf32>
    %3 = tpu.matmul %1, %2, %cst {dimension_numbers = #tpu.dot_dimension_numbers<[1], [0], [0], [1], [0, 0, 1, 1], [], []>} : vector<8x256xbf16>, vector<256x512xbf16>, vector<8x512xf32> -> vector<8x512xf32>
    %c0_3 = arith.constant 0 : index
    %c0_4 = arith.constant 0 : index
    %4 = vector.load %arg3[%c0_3, %c0_4] : memref<1x512xf32, #tpu.memory_space<vmem>>, vector<1x512xf32>
    %5 = vector.broadcast %4 : vector<1x512xf32> to vector<8x512xf32>
    %6 = arith.addf %3, %5 : vector<8x512xf32>
    %7 = vector.extract_strided_slice %6 {offsets = [0, 0], sizes = [8, 256], strides = [1, 1]} : vector<8x512xf32> to vector<8x256xf32>
    %cst_5 = arith.constant 0.000000e+00 : f32
    %8 = vector.broadcast %cst_5 : f32 to vector<8x256xf32>
    %9 = arith.maximumf %7, %8 : vector<8x256xf32>
    %10 = vector.extract_strided_slice %6 {offsets = [0, 256], sizes = [8, 256], strides = [1, 1]} : vector<8x512xf32> to vector<8x256xf32>
    %11 = arith.negf %10 : vector<8x256xf32>
    %12 = math.exp %11 : vector<8x256xf32>
    %cst_6 = arith.constant 1.000000e+00 : f32
    %13 = vector.broadcast %cst_6 : f32 to vector<8x256xf32>
    %14 = arith.addf %13, %12 : vector<8x256xf32>
    %15 = arith.divf %13, %14 : vector<8x256xf32>
    %16 = arith.subf %9, %0 : vector<8x256xf32>
    %17 = arith.mulf %15, %16 : vector<8x256xf32>
    %18 = arith.addf %0, %17 : vector<8x256xf32>
    %c0_7 = arith.constant 0 : index
    %c0_8 = arith.constant 0 : index
    %19 = vector.load %arg4[%c0_7, %c0_8] : memref<8x256xf32, #tpu.memory_space<vmem>>, vector<8x256xf32>
    tpu.vector_store %arg4[%c0_7, %c0_8], %18 {strides = array<i32>} : memref<8x256xf32, #tpu.memory_space<vmem>>, vector<8x256xf32>,
    return
  }
  func.func @transform_0(%arg0: i32) -> (i32, i32) {
    %c0_i32 = arith.constant 0 : i32
    %c0_i32_0 = arith.constant 0 : i32
    return %arg0, %c0_i32 : i32, i32
  }
  func.func @transform_1(%arg0: i32) -> (i32, i32) {
    %c0_i32 = arith.constant 0 : i32
    %c0_i32_0 = arith.constant 0 : i32
    %c0_i32_1 = arith.constant 0 : i32
    return %c0_i32, %c0_i32_0 : i32, i32
  }
  func.func @transform_2(%arg0: i32) -> (i32, i32) {
    %c0_i32 = arith.constant 0 : i32
    %c0_i32_0 = arith.constant 0 : i32
    %c0_i32_1 = arith.constant 0 : i32
    return %c0_i32, %c0_i32_0 : i32, i32
  }
  func.func @transform_3(%arg0: i32) -> (i32, i32) {
    %c0_i32 = arith.constant 0 : i32
    %c0_i32_0 = arith.constant 0 : i32
    return %arg0, %c0_i32 : i32, i32
  }
}

</mosaic_0001>

<llo_original>
// kernel: tpu_custom_call.1
$region0: #{tpu_custom_call.1}
  #allocation0 [shape = 'u32[]', space=smem, size = 0x4, offset = 0x4, fixed_abs, tag = 'smem constant byte address 0x4 - core index']
  #allocation1 [shape = 'u32[72,128]{1,0:T(1,128)}', space=vmem, size = 0x9000, scoped, tag = 'internal scratch']
  %s0 = inlined_call_operand.hbm [shape: f32[8,256], index: 0, kind: input, shape index: {}]
  %s1 = inlined_call_operand.hbm [shape: bf16[256,512], index: 1, kind: input, shape index: {}]
  %s2 = inlined_call_operand.hbm [shape: f32[1,512], index: 2, kind: input, shape index: {}]
  %s3 = inlined_call_operand.hbm [shape: f32[8,256], index: 3, kind: output, shape index: {}]
  %s4 = sld [smem:[#allocation0]]
  $region34: #{tpu_custom_call.1} parent=0
    _
  %s6 = ssub.s32 1, %s4
  %s7 = scalar_select 0, %s6, %s4
  $region1: #{tpu_custom_call.1} parent=0
    #allocation2 [shape = 'u8[8192]{0}', space=vmem, size = 0x2000, scoped, tag = 'input window, operand 0, single buffered']
    #allocation3 [shape = 's32[1]{0}', space=sflag, size = 0x4, scoped, tag = 'scoped memory for tpu_custom_call.1']
    #allocation4 [shape = 's32[1]{0}', space=sflag, size = 0x4, scoped, tag = 'scoped memory for tpu_custom_call.1']
    #allocation5 [shape = 'u8[262144]{0}', space=vmem, size = 0x40000, scoped, tag = 'input window, operand 1, single buffered']
    #allocation6 [shape = 's32[1]{0}', space=sflag, size = 0x4, scoped, tag = 'scoped memory for tpu_custom_call.1']
    #allocation7 [shape = 'u8[2048]{0}', space=vmem, size = 0x800, scoped, tag = 'input window, operand 2, single buffered']
    #allocation8 [shape = 'u8[8192]{0}', space=vmem, size = 0x2000, scoped, tag = 'output window, operand 0, single buffered']
    %8 = vsyncpa [#allocation3], 0
    %9 = vsyncpa [#allocation6], 0
    %10 = vsyncpa [#allocation4], 0
    // Predicated region
    $region2: #{tpu_custom_call.1} parent=1 // pred_check
      _
    $region3: #{tpu_custom_call.1} parent=1 // pred_check_branch
      %12 = sbr.rel (0) target = $region5
    $region4: #{tpu_custom_call.1} parent=1 // pred_region
      %14 = vsyncadd [#allocation3], 0
      %s16 = sshll.u32 %s0, 4
      %s17 = int_to_ptr.hbm [resolvable:$true] %s16
      %s18 = sshll.u32 [#allocation2], 4
      %s19 = int_to_ptr.vmem [resolvable:$true] %s18
      %21 = dma.hbm_to_vmem [thread:$0]  %s17, 256, %s19, [#allocation3]
    $region5: #{tpu_custom_call.1} parent=1 // pred_fallthru
      _
    // Predicated region
    $region6: #{tpu_custom_call.1} parent=1 // pred_check
      _
    $region7: #{tpu_custom_call.1} parent=1 // pred_check_branch
      %23 = sbr.rel (0) target = $region9
    $region8: #{tpu_custom_call.1} parent=1 // pred_region
      %25 = vsyncadd [#allocation6], 0
      %s26 = sshll.u32 %s1, 4
      %s27 = int_to_ptr.hbm [resolvable:$true] %s26
      %s28 = sshll.u32 [#allocation5], 4
      %s29 = int_to_ptr.vmem [resolvable:$true] %s28
      %34 = dma.hbm_to_vmem [thread:$0]  %s27, 8192, %s29, [#allocation6], 256, 256, 16
    $region9: #{tpu_custom_call.1} parent=1 // pred_fallthru
      _
    // Predicated region
    $region10: #{tpu_custom_call.1} parent=1 // pred_check
      _
    $region11: #{tpu_custom_call.1} parent=1 // pred_check_branch
      %36 = sbr.rel (0) target = $region13
    $region12: #{tpu_custom_call.1} parent=1 // pred_region
      %38 = vsyncadd [#allocation6], 0
      %s40 = sshll.u32 %s2, 4
      %s41 = int_to_ptr.hbm [resolvable:$true] %s40
      %s42 = sshll.u32 [#allocation7], 4
      %s43 = int_to_ptr.vmem [resolvable:$true] %s42
      %45 = dma.hbm_to_vmem [thread:$0]  %s41, 64, %s43, [#allocation6]
    $region13: #{tpu_custom_call.1} parent=1 // pred_fallthru
      _
    // Predicated region
    $region14: #{tpu_custom_call.1} parent=1 // pred_check
      _
    $region15: #{tpu_custom_call.1} parent=1 // pred_check_branch
      %47 = sbr.rel (0) target = $region17
    $region16: #{tpu_custom_call.1} parent=1 // pred_region
      %49 = dma.done [#allocation3], 256
    $region17: #{tpu_custom_call.1} parent=1 // pred_fallthru
      _
    // Predicated region
    $region18: #{tpu_custom_call.1} parent=1 // pred_check
      _
    $region19: #{tpu_custom_call.1} parent=1 // pred_check_branch
      %51 = sbr.rel (0) target = $region21
    $region20: #{tpu_custom_call.1} parent=1 // pred_region
      %53 = dma.done [#allocation6], 8192
    $region21: #{tpu_custom_call.1} parent=1 // pred_fallthru
      _
    // Predicated region
    $region22: #{tpu_custom_call.1} parent=1 // pred_check
      _
    $region23: #{tpu_custom_call.1} parent=1 // pred_check_branch
      %55 = sbr.rel (0) target = $region25
    $region24: #{tpu_custom_call.1} parent=1 // pred_region
      %57 = dma.done [#allocation6], 64
    $region25: #{tpu_custom_call.1} parent=1 // pred_fallthru
      _
    %v58 = vld [vmem:[#allocation2] sm:$0xff]
    %v59 = vld [vmem:[#allocation2 + $0x8] sm:$0xff]
    %v60 = vpack.c.bf16 %v58, %v58
    %v61 = vpack.c.bf16 %v59, %v59
    %v62 = vld [vmem:[#allocation5] sm:$0xff]
    %v63 = vld [vmem:[#allocation5 + $0x8] sm:$0xff]
    %v64 = vld [vmem:[#allocation5 + $0x10] sm:$0xff]
    %v65 = vld [vmem:[#allocation5 + $0x18] sm:$0xff]
    %v66 = vld [vmem:[#allocation5 + $0x20] sm:$0xff]
    %v67 = vld [vmem:[#allocation5 + $0x28] sm:$0xff]
    %v68 = vld [vmem:[#allocation5 + $0x30] sm:$0xff]
    %v69 = vld [vmem:[#allocation5 + $0x38] sm:$0xff]
    %v70 = vld [vmem:[#allocation5 + $0x40] sm:$0xff]
    %v71 = vld [vmem:[#allocation5 + $0x48] sm:$0xff]
    %v72 = vld [vmem:[#allocation5 + $0x50] sm:$0xff]
    %v73 = vld [vmem:[#allocation5 + $0x58] sm:$0xff]
    %v74 = vld [vmem:[#allocation5 + $0x60] sm:$0xff]
    %v75 = vld [vmem:[#allocation5 + $0x68] sm:$0xff]
    %v76 = vld [vmem:[#allocation5 + $0x70] sm:$0xff]
    %v77 = vld [vmem:[#allocation5 + $0x78] sm:$0xff]
    %v78 = vld [vmem:[#allocation5 + $0x80] sm:$0xff]
    %v79 = vld [vmem:[#allocation5 + $0x88] sm:$0xff]
    %v80 = vld [vmem:[#allocation5 + $0x90] sm:$0xff]
    %v81 = vld [vmem:[#allocation5 + $0x98] sm:$0xff]
    %v82 = vld [vmem:[#allocation5 + $0xa0] sm:$0xff]
    %v83 = vld [vmem:[#allocation5 + $0xa8] sm:$0xff]
    %v84 = vld [vmem:[#allocation5 + $0xb0] sm:$0xff]
    %v85 = vld [vmem:[#allocation5 + $0xb8] sm:$0xff]
    %v86 = vld [vmem:[#allocation5 + $0xc0] sm:$0xff]
    %v87 = vld [vmem:[#allocation5 + $0xc8] sm:$0xff]
    %v88 = vld [vmem:[#allocation5 + $0xd0] sm:$0xff]
    %v89 = vld [vmem:[#allocation5 + $0xd8] sm:$0xff]
    %v90 = vld [vmem:[#allocation5 + $0xe0] sm:$0xff]
    %v91 = vld [vmem:[#allocation5 + $0xe8] sm:$0xff]
    %v92 = vld [vmem:[#allocation5 + $0xf0] sm:$0xff]
    %v93 = vld [vmem:[#allocation5 + $0xf8] sm:$0xff]
    %v94 = vld [vmem:[#allocation5 + $0x100] sm:$0xff]
    %v95 = vld [vmem:[#allocation5 + $0x108] sm:$0xff]
    %v96 = vld [vmem:[#allocation5 + $0x110] sm:$0xff]
    %v97 = vld [vmem:[#allocation5 + $0x118] sm:$0xff]
    %v98 = vld [vmem:[#allocation5 + $0x120] sm:$0xff]
    %v99 = vld [vmem:[#allocation5 + $0x128] sm:$0xff]
    %v100 = vld [vmem:[#allocation5 + $0x130] sm:$0xff]
    %v101 = vld [vmem:[#allocation5 + $0x138] sm:$0xff]
    %v102 = vld [vmem:[#allocation5 + $0x140] sm:$0xff]
    %v103 = vld [vmem:[#allocation5 + $0x148] sm:$0xff]
    %v104 = vld [vmem:[#allocation5 + $0x150] sm:$0xff]
    %v105 = vld [vmem:[#allocation5 + $0x158] sm:$0xff]
    %v106 = vld [vmem:[#allocation5 + $0x160] sm:$0xff]
    %v107 = vld [vmem:[#allocation5 + $0x168] sm:$0xff]
    %v108 = vld [vmem:[#allocation5 + $0x170] sm:$0xff]
    %v109 = vld [vmem:[#allocation5 + $0x178] sm:$0xff]
    %v110 = vld [vmem:[#allocation5 + $0x180] sm:$0xff]
    %v111 = vld [vmem:[#allocation5 + $0x188] sm:$0xff]
    %v112 = vld [vmem:[#allocation5 + $0x190] sm:$0xff]
    %v113 = vld [vmem:[#allocation5 + $0x198] sm:$0xff]
    %v114 = vld [vmem:[#allocation5 + $0x1a0] sm:$0xff]
    %v115 = vld [vmem:[#allocation5 + $0x1a8] sm:$0xff]
    %v116 = vld [vmem:[#allocation5 + $0x1b0] sm:$0xff]
    %v117 = vld [vmem:[#allocation5 + $0x1b8] sm:$0xff]
    %v118 = vld [vmem:[#allocation5 + $0x1c0] sm:$0xff]
    %v119 = vld [vmem:[#allocation5 + $0x1c8] sm:$0xff]
    %v120 = vld [vmem:[#allocation5 + $0x1d0] sm:$0xff]
    %v121 = vld [vmem:[#allocation5 + $0x1d8] sm:$0xff]
    %v122 = vld [vmem:[#allocation5 + $0x1e0] sm:$0xff]
    %v123 = vld [vmem:[#allocation5 + $0x1e8] sm:$0xff]
    %v124 = vld [vmem:[#allocation5 + $0x1f0] sm:$0xff]
    %v125 = vld [vmem:[#allocation5 + $0x1f8] sm:$0xff]
    %v126 = vld [vmem:[#allocation7] sm:$0xf]
    %v128 = vperm.slane %v126, 0
    %v129 = vperm.slane %v126, 1
    %v130 = vperm.slane %v126, 2
    %v131 = vperm.slane %v126, 3
    %v200 = vunpack.c.l.b16 %v62
    %v201 = vunpack.c.h.b16 %v62
    %v202 = vunpack.c.l.b16 %v63
    %v203 = vunpack.c.h.b16 %v63
    %v204 = vunpack.c.l.b16 %v64
    %v205 = vunpack.c.h.b16 %v64
    %v206 = vunpack.c.l.b16 %v65
    %v207 = vunpack.c.h.b16 %v65
    %v208 = vunpack.c.l.b16 %v66
    %v209 = vunpack.c.h.b16 %v66
    %v210 = vunpack.c.l.b16 %v67
    %v211 = vunpack.c.h.b16 %v67
    %v212 = vunpack.c.l.b16 %v68
    %v213 = vunpack.c.h.b16 %v68
    %v214 = vunpack.c.l.b16 %v69
    %v215 = vunpack.c.h.b16 %v69
    %v216 = vunpack.c.l.b16 %v70
    %v217 = vunpack.c.h.b16 %v70
    %v218 = vunpack.c.l.b16 %v71
    %v219 = vunpack.c.h.b16 %v71
    %v220 = vunpack.c.l.b16 %v72
    %v221 = vunpack.c.h.b16 %v72
    %v222 = vunpack.c.l.b16 %v73
    %v223 = vunpack.c.h.b16 %v73
    %v224 = vunpack.c.l.b16 %v74
    %v225 = vunpack.c.h.b16 %v74
    %v226 = vunpack.c.l.b16 %v75
    %v227 = vunpack.c.h.b16 %v75
    %v228 = vunpack.c.l.b16 %v76
    %v229 = vunpack.c.h.b16 %v76
    %v230 = vunpack.c.l.b16 %v77
    %v231 = vunpack.c.h.b16 %v77
    %v232 = vunpack.c.l.b16 %v78
    %v233 = vunpack.c.h.b16 %v78
    %v234 = vunpack.c.l.b16 %v79
    %v235 = vunpack.c.h.b16 %v79
    %v236 = vunpack.c.l.b16 %v80
    %v237 = vunpack.c.h.b16 %v80
    %v238 = vunpack.c.l.b16 %v81
    %v239 = vunpack.c.h.b16 %v81
    %v240 = vunpack.c.l.b16 %v82
    %v241 = vunpack.c.h.b16 %v82
    %v242 = vunpack.c.l.b16 %v83
    %v243 = vunpack.c.h.b16 %v83
    %v244 = vunpack.c.l.b16 %v84
    %v245 = vunpack.c.h.b16 %v84
    %v246 = vunpack.c.l.b16 %v85
    %v247 = vunpack.c.h.b16 %v85
    %v248 = vunpack.c.l.b16 %v86
    %v249 = vunpack.c.h.b16 %v86
    %v250 = vunpack.c.l.b16 %v87
    %v251 = vunpack.c.h.b16 %v87
    %v252 = vunpack.c.l.b16 %v88
    %v253 = vunpack.c.h.b16 %v88
    %v254 = vunpack.c.l.b16 %v89
    %v255 = vunpack.c.h.b16 %v89
    %v256 = vunpack.c.l.b16 %v90
    %v257 = vunpack.c.h.b16 %v90
    %v258 = vunpack.c.l.b16 %v91
    %v259 = vunpack.c.h.b16 %v91
    %v260 = vunpack.c.l.b16 %v92
    %v261 = vunpack.c.h.b16 %v92
    %v262 = vunpack.c.l.b16 %v93
    %v263 = vunpack.c.h.b16 %v93
    %v264 = vunpack.c.l.b16 %v94
    %v265 = vunpack.c.h.b16 %v94
    %v266 = vunpack.c.l.b16 %v95
    %v267 = vunpack.c.h.b16 %v95
    %v268 = vunpack.c.l.b16 %v96
    %v269 = vunpack.c.h.b16 %v96
    %v270 = vunpack.c.l.b16 %v97
    %v271 = vunpack.c.h.b16 %v97
    %v272 = vunpack.c.l.b16 %v98
    %v273 = vunpack.c.h.b16 %v98
    %v274 = vunpack.c.l.b16 %v99
    %v275 = vunpack.c.h.b16 %v99
    %v276 = vunpack.c.l.b16 %v100
    %v277 = vunpack.c.h.b16 %v100
    %v278 = vunpack.c.l.b16 %v101
    %v279 = vunpack.c.h.b16 %v101
    %v280 = vunpack.c.l.b16 %v102
    %v281 = vunpack.c.h.b16 %v102
    %v282 = vunpack.c.l.b16 %v103
    %v283 = vunpack.c.h.b16 %v103
    %v284 = vunpack.c.l.b16 %v104
    %v285 = vunpack.c.h.b16 %v104
    %v286 = vunpack.c.l.b16 %v105
    %v287 = vunpack.c.h.b16 %v105
    %v288 = vunpack.c.l.b16 %v106
    %v289 = vunpack.c.h.b16 %v106
    %v290 = vunpack.c.l.b16 %v107
    %v291 = vunpack.c.h.b16 %v107
    %v292 = vunpack.c.l.b16 %v108
    %v293 = vunpack.c.h.b16 %v108
    %v294 = vunpack.c.l.b16 %v109
    %v295 = vunpack.c.h.b16 %v109
    %v296 = vunpack.c.l.b16 %v110
    %v297 = vunpack.c.h.b16 %v110
    %v298 = vunpack.c.l.b16 %v111
    %v299 = vunpack.c.h.b16 %v111
    %v300 = vunpack.c.l.b16 %v112
    %v301 = vunpack.c.h.b16 %v112
    %v302 = vunpack.c.l.b16 %v113
    %v303 = vunpack.c.h.b16 %v113
    %v304 = vunpack.c.l.b16 %v114
    %v305 = vunpack.c.h.b16 %v114
    %v306 = vunpack.c.l.b16 %v115
    %v307 = vunpack.c.h.b16 %v115
    %v308 = vunpack.c.l.b16 %v116
    %v309 = vunpack.c.h.b16 %v116
    %v310 = vunpack.c.l.b16 %v117
    %v311 = vunpack.c.h.b16 %v117
    %v312 = vunpack.c.l.b16 %v118
    %v313 = vunpack.c.h.b16 %v118
    %v314 = vunpack.c.l.b16 %v119
    %v315 = vunpack.c.h.b16 %v119
    %v316 = vunpack.c.l.b16 %v120
    %v317 = vunpack.c.h.b16 %v120
    %v318 = vunpack.c.l.b16 %v121
    %v319 = vunpack.c.h.b16 %v121
    %v320 = vunpack.c.l.b16 %v122
    %v321 = vunpack.c.h.b16 %v122
    %v322 = vunpack.c.l.b16 %v123
    %v323 = vunpack.c.h.b16 %v123
    %v324 = vunpack.c.l.b16 %v124
    %v325 = vunpack.c.h.b16 %v124
    %v326 = vunpack.c.l.b16 %v125
    %v327 = vunpack.c.h.b16 %v125
    %v328 = vpack.c.b16 %v204, %v200
    %v329 = vpack.c.b16 %v205, %v201
    %v330 = vpack.c.b16 %v206, %v202
    %v331 = vpack.c.b16 %v207, %v203
    %v332 = vpack.c.b16 %v212, %v208
    %v333 = vpack.c.b16 %v213, %v209
    %v334 = vpack.c.b16 %v214, %v210
    %v335 = vpack.c.b16 %v215, %v211
    %v336 = vpack.c.b16 %v220, %v216
    %v337 = vpack.c.b16 %v221, %v217
    %v338 = vpack.c.b16 %v222, %v218
    %v339 = vpack.c.b16 %v223, %v219
    %v340 = vpack.c.b16 %v228, %v224
    %v341 = vpack.c.b16 %v229, %v225
    %v342 = vpack.c.b16 %v230, %v226
    %v343 = vpack.c.b16 %v231, %v227
    %v344 = vpack.c.b16 %v236, %v232
    %v345 = vpack.c.b16 %v237, %v233
    %v346 = vpack.c.b16 %v238, %v234
    %v347 = vpack.c.b16 %v239, %v235
    %v348 = vpack.c.b16 %v244, %v240
    %v349 = vpack.c.b16 %v245, %v241
    %v350 = vpack.c.b16 %v246, %v242
    %v351 = vpack.c.b16 %v247, %v243
    %v352 = vpack.c.b16 %v252, %v248
    %v353 = vpack.c.b16 %v253, %v249
    %v354 = vpack.c.b16 %v254, %v250
    %v355 = vpack.c.b16 %v255, %v251
    %v356 = vpack.c.b16 %v260, %v256
    %v357 = vpack.c.b16 %v261, %v257
    %v358 = vpack.c.b16 %v262, %v258
    %v359 = vpack.c.b16 %v263, %v259
    %v360 = vpack.c.b16 %v268, %v264
    %v361 = vpack.c.b16 %v269, %v265
    %v362 = vpack.c.b16 %v270, %v266
    %v363 = vpack.c.b16 %v271, %v267
    %v364 = vpack.c.b16 %v276, %v272
    %v365 = vpack.c.b16 %v277, %v273
    %v366 = vpack.c.b16 %v278, %v274
    %v367 = vpack.c.b16 %v279, %v275
    %v368 = vpack.c.b16 %v284, %v280
    %v369 = vpack.c.b16 %v285, %v281
    %v370 = vpack.c.b16 %v286, %v282
    %v371 = vpack.c.b16 %v287, %v283
    %v372 = vpack.c.b16 %v292, %v288
    %v373 = vpack.c.b16 %v293, %v289
    %v374 = vpack.c.b16 %v294, %v290
    %v375 = vpack.c.b16 %v295, %v291
    %v376 = vpack.c.b16 %v300, %v296
    %v377 = vpack.c.b16 %v301, %v297
    %v378 = vpack.c.b16 %v302, %v298
    %v379 = vpack.c.b16 %v303, %v299
    %v380 = vpack.c.b16 %v308, %v304
    %v381 = vpack.c.b16 %v309, %v305
    %v382 = vpack.c.b16 %v310, %v306
    %v383 = vpack.c.b16 %v311, %v307
    %v384 = vpack.c.b16 %v316, %v312
    %v385 = vpack.c.b16 %v317, %v313
    %v386 = vpack.c.b16 %v318, %v314
    %v387 = vpack.c.b16 %v319, %v315
    %v388 = vpack.c.b16 %v324, %v320
    %v389 = vpack.c.b16 %v325, %v321
    %v390 = vpack.c.b16 %v326, %v322
    %v391 = vpack.c.b16 %v327, %v323
    %456 = vmatpush.bf16.msra.mxu0 %v356
    %457 = vmatpush.bf16.msra.mxu0 %v352
    %458 = vmatpush.bf16.msra.mxu0 %v348
    %459 = vmatpush.bf16.msra.mxu0 %v344
    %460 = vmatpush.bf16.msra.mxu0 %v340
    %461 = vmatpush.bf16.msra.mxu0 %v336
    %462 = vmatpush.bf16.msra.mxu0 %v332
    %463 = vmatpush.bf16.msra.mxu0 %v328
    %464 = vmatmul.bf16.gmra.mxu0 %v60
    %v465 = vpop.f32.mrf.mxu0
    %v466 = vadd.f32 %v128, %v465
    %v467 = vpop.f32.mrf.mxu0
    %468 = vdwg.mxu0
    %469 = vmatpush.bf16.msra.mxu0 %v388
    %470 = vmatpush.bf16.msra.mxu0 %v384
    %471 = vmatpush.bf16.msra.mxu0 %v380
    %472 = vmatpush.bf16.msra.mxu0 %v376
    %473 = vmatpush.bf16.msra.mxu0 %v372
    %474 = vmatpush.bf16.msra.mxu0 %v368
    %475 = vmatpush.bf16.msra.mxu0 %v364
    %476 = vmatpush.bf16.msra.mxu0 %v360
    %477 = vmatmul.bf16.gmra.mxu0 %v61
    %v478 = vpop.f32.mrf.mxu0
    %v479 = vadd.f32 %v466, %v478
    %v480 = vpop.f32.mrf.mxu0
    %481 = vdwg.mxu0
    %482 = vmatpush.bf16.msra.mxu0 %v357
    %483 = vmatpush.bf16.msra.mxu0 %v353
    %484 = vmatpush.bf16.msra.mxu0 %v349
    %485 = vmatpush.bf16.msra.mxu0 %v345
    %486 = vmatpush.bf16.msra.mxu0 %v341
    %487 = vmatpush.bf16.msra.mxu0 %v337
    %488 = vmatpush.bf16.msra.mxu0 %v333
    %489 = vmatpush.bf16.msra.mxu0 %v329
    %490 = vmatmul.bf16.gmra.mxu0 %v60
    %v491 = vpop.f32.mrf.mxu0
    %v492 = vadd.f32 %v129, %v491
    %v493 = vpop.f32.mrf.mxu0
    %494 = vdwg.mxu0
    %495 = vmatpush.bf16.msra.mxu0 %v389
    %496 = vmatpush.bf16.msra.mxu0 %v385
    %497 = vmatpush.bf16.msra.mxu0 %v381
    %498 = vmatpush.bf16.msra.mxu0 %v377
    %499 = vmatpush.bf16.msra.mxu0 %v373
    %500 = vmatpush.bf16.msra.mxu0 %v369
    %501 = vmatpush.bf16.msra.mxu0 %v365
    %502 = vmatpush.bf16.msra.mxu0 %v361
    %503 = vmatmul.bf16.gmra.mxu0 %v61
    %v504 = vpop.f32.mrf.mxu0
    %v505 = vadd.f32 %v492, %v504
    %v506 = vpop.f32.mrf.mxu0
    %507 = vdwg.mxu0
    %508 = vmatpush.bf16.msra.mxu0 %v358
    %509 = vmatpush.bf16.msra.mxu0 %v354
    %510 = vmatpush.bf16.msra.mxu0 %v350
    %511 = vmatpush.bf16.msra.mxu0 %v346
    %512 = vmatpush.bf16.msra.mxu0 %v342
    %513 = vmatpush.bf16.msra.mxu0 %v338
    %514 = vmatpush.bf16.msra.mxu0 %v334
    %515 = vmatpush.bf16.msra.mxu0 %v330
    %516 = vmatmul.bf16.gmra.mxu0 %v60
    %v517 = vpop.f32.mrf.mxu0
    %v518 = vadd.f32 %v130, %v517
    %v519 = vpop.f32.mrf.mxu0
    %520 = vdwg.mxu0
    %521 = vmatpush.bf16.msra.mxu0 %v390
    %522 = vmatpush.bf16.msra.mxu0 %v386
    %523 = vmatpush.bf16.msra.mxu0 %v382
    %524 = vmatpush.bf16.msra.mxu0 %v378
    %525 = vmatpush.bf16.msra.mxu0 %v374
    %526 = vmatpush.bf16.msra.mxu0 %v370
    %527 = vmatpush.bf16.msra.mxu0 %v366
    %528 = vmatpush.bf16.msra.mxu0 %v362
    %529 = vmatmul.bf16.gmra.mxu0 %v61
    %v530 = vpop.f32.mrf.mxu0
    %v531 = vadd.f32 %v518, %v530
    %v532 = vpop.f32.mrf.mxu0
    %533 = vdwg.mxu0
    %534 = vmatpush.bf16.msra.mxu0 %v359
    %535 = vmatpush.bf16.msra.mxu0 %v355
    %536 = vmatpush.bf16.msra.mxu0 %v351
    %537 = vmatpush.bf16.msra.mxu0 %v347
    %538 = vmatpush.bf16.msra.mxu0 %v343
    %539 = vmatpush.bf16.msra.mxu0 %v339
    %540 = vmatpush.bf16.msra.mxu0 %v335
    %541 = vmatpush.bf16.msra.mxu0 %v331
    %542 = vmatmul.bf16.gmra.mxu0 %v60
    %v543 = vpop.f32.mrf.mxu0
    %v544 = vadd.f32 %v131, %v543
    %v545 = vpop.f32.mrf.mxu0
    %546 = vdwg.mxu0
    %547 = vmatpush.bf16.msra.mxu0 %v391
    %548 = vmatpush.bf16.msra.mxu0 %v387
    %549 = vmatpush.bf16.msra.mxu0 %v383
    %550 = vmatpush.bf16.msra.mxu0 %v379
    %551 = vmatpush.bf16.msra.mxu0 %v375
    %552 = vmatpush.bf16.msra.mxu0 %v371
    %553 = vmatpush.bf16.msra.mxu0 %v367
    %554 = vmatpush.bf16.msra.mxu0 %v363
    %555 = vmatmul.bf16.gmra.mxu0 %v61
    %v556 = vpop.f32.mrf.mxu0
    %v557 = vadd.f32 %v544, %v556
    %v558 = vpop.f32.mrf.mxu0
    %559 = vdwg.mxu0
    %v560 = vmax.f32 %v479, 0.0
    %v561 = vmax.f32 %v505, 0.0
    %v562 = vxor.u32 %v531, 2147483648
    %v563 = vxor.u32 %v557, 2147483648
    %v564 = vmul.f32 %v562, 1.442695
    %v565 = vpow.pop %v564
    %v566 = vmul.f32 %v563, 1.442695
    %v567 = vpow.pop %v566
    %v568 = vadd.f32 %v565, 1.0
    %v569 = vadd.f32 %v567, 1.0
    %v570 = vrcp.pop %v568
    %v571 = vmul.f32 %v568, %v570
    %v572 = vsub.f32 1.0, %v571
    %v573 = vmul.f32 %v570, %v572
    %v574 = vadd.f32 %v570, %v573
    %vm575 = vweird.f32 %v568
    %vm576 = vweird.f32 %v570
    %vm577 = vmor %vm575, %vm576
    %v578 = vsel %vm577, %v570, %v574
    %v579 = vand.u32 2147483647, %v568
    %vm580 = vcmp.eq.f32.partialorder %v579, 8.507059e+37
    %v581 = vand.u32 %v568, 2147483648
    %v582 = vor.u32 1.1754944e-38, %v581
    %v583 = vsel %vm580, %v582, %v578
    %v584 = vmul.f32 1.0, %v583
    %v585 = vrcp.pop %v569
    %v586 = vmul.f32 %v569, %v585
    %v587 = vsub.f32 1.0, %v586
    %v588 = vmul.f32 %v585, %v587
    %v589 = vadd.f32 %v585, %v588
    %vm590 = vweird.f32 %v569
    %vm591 = vweird.f32 %v585
    %vm592 = vmor %vm590, %vm591
    %v593 = vsel %vm592, %v585, %v589
    %v594 = vand.u32 2147483647, %v569
    %vm595 = vcmp.eq.f32.partialorder %v594, 8.507059e+37
    %v596 = vand.u32 %v569, 2147483648
    %v597 = vor.u32 1.1754944e-38, %v596
    %v598 = vsel %vm595, %v597, %v593
    %v599 = vmul.f32 1.0, %v598
    %v600 = vsub.f32 %v560, %v58
    %v601 = vsub.f32 %v561, %v59
    %v602 = vmul.f32 %v584, %v600
    %v603 = vmul.f32 %v599, %v601
    %v604 = vadd.f32 %v58, %v602
    %v605 = vadd.f32 %v59, %v603
    %606 = vst [vmem:[#allocation8] sm:$0xff] %v604
    %607 = vst [vmem:[#allocation8 + $0x8] sm:$0xff] %v605
    // Predicated region
    $region26: #{tpu_custom_call.1} parent=1 // pred_check
      _
    $region27: #{tpu_custom_call.1} parent=1 // pred_check_branch
      %609 = sbr.rel (0) target = $region29
    $region28: #{tpu_custom_call.1} parent=1 // pred_region
      %611 = vsyncadd [#allocation4], 0
      %s613 = sshll.u32 [#allocation8], 4
      %s614 = int_to_ptr.vmem [resolvable:$true] %s613
      %s615 = sshll.u32 %s3, 4
      %s616 = int_to_ptr.hbm [resolvable:$true] %s615
      %618 = dma.vmem_to_hbm [thread:$0]  %s614, 256, %s616, [#allocation4]
    $region29: #{tpu_custom_call.1} parent=1 // pred_fallthru
      _
    // Predicated region
    $region30: #{tpu_custom_call.1} parent=1 // pred_check
      _
    $region31: #{tpu_custom_call.1} parent=1 // pred_check_branch
      %620 = sbr.rel (0) target = $region33
    $region32: #{tpu_custom_call.1} parent=1 // pred_region
      %622 = dma.done [#allocation4], 256
    $region33: #{tpu_custom_call.1} parent=1 // pred_fallthru
      _
    %623 = vsyncpa [#allocation3], 1
    %624 = vsyncpa [#allocation6], 1
    %625 = vsyncpa [#allocation4], 1

</llo_original>
